<compile_context>
chip_gen: v7x
topology: tpu7x:2x2x1
jax: 0.10.0
libtpu: 0.0.40
codegen_flags: <defaults>
</compile_context>

<pallas_src>
import numpy as np

import jax
import jax.numpy as jnp
from jax.experimental import pallas as pl
from jax.experimental.pallas import tpu as pltpu


def _bilinear_up_matrix_np(n: int) -> np.ndarray:
    """[2n, n] 1-D interpolation matrix matching torch.nn.Upsample(
    scale_factor=2, mode='bilinear', align_corners=False) along one axis."""
    i = np.arange(2 * n, dtype=np.float64)
    src = (i + 0.5) / 2.0 - 0.5
    src = np.maximum(src, 0.0)              # torch clamps negative src to 0
    i0 = np.floor(src).astype(np.int64)
    frac = src - i0
    i1 = np.minimum(i0 + 1, n - 1)
    u = np.zeros((2 * n, n), dtype=np.float32)
    rows = np.arange(2 * n)
    u[rows, i0] += (1.0 - frac)
    u[rows, i1] += frac
    return u


def _pick_btile(batch: int, per_sample_bytes: int) -> int:
    """Largest divisor of `batch` that keeps >= 2 grid steps (for v7x's two
    TensorCores) and a modest per-step VMEM footprint."""
    if batch <= 2:
        return 1
    cap = max(1, (4 << 20) // max(per_sample_bytes, 1))
    best = 1
    for d in range(1, batch // 2 + 1):
        if batch % d == 0 and d <= cap:
            best = d
    return best


def _make_rgb_kernel(btile: int, out_c: int, H: int, W: int,
                     has_prev: bool, upsample: bool):
    """Per-grid-step kernel body for the given static configuration."""

    def kernel(*refs):
        istyle_ref, sw_ref, sb_ref, e_ref, cwi_ref, x_ref = refs[:6]
        i = 6
        prev_ref = uwt_ref = uh_ref = None
        if has_prev:
            prev_ref = refs[i]; i += 1
        if upsample:
            uwt_ref = refs[i]; uh_ref = refs[i + 1]; i += 2
        o_ref = refs[i]

        sw = sw_ref[...]        # (C, L)        nn.Linear weight
        sb = sb_ref[...]        # (C, 1)        nn.Linear bias (column)
        e = e_ref[...]          # (C*H, C)      channel -> row-repeat matrix
        cwi = cwi_ref[...]      # (out_c*H, C*H) = kron(conv_w, I_H)
        if upsample:
            uwt = uwt_ref[...]  # (W, 2W)       width-upsample (transposed)
            uh = uh_ref[...]    # (2H, H)       height-upsample

        for b in range(btile):  # static unroll, btile is small
            # to_style (nn.Linear), column form: (C,L)@(L,1) + (C,1)
            style = jnp.dot(sw, istyle_ref[b],
                            preferred_element_type=jnp.float32) + sb
            # per-channel modulation repeated over the H rows: (C*H, 1)
            mod = jnp.dot(e, style, preferred_element_type=jnp.float32) + 1.0
            # modulate activations (VPU lane-broadcast), keep conv weight static
            xm = x_ref[b] * mod                                   # (C*H, W)
            # modulated 1x1 conv (demod=False) as one 2-D matmul
            y = jnp.dot(cwi, xm, preferred_element_type=jnp.float32)  # (out_c*H, W)
            if has_prev:
                y = y + prev_ref[b]
            if upsample:
                # separable bilinear x2: width pass along the lane axis ...
                yw = jnp.dot(y, uwt, preferred_element_type=jnp.float32)  # (out_c*H, 2W)
                # ... then height pass, one small 2-D matmul per output channel.
                for o in range(out_c):
                    z = jnp.dot(uh, yw[o * H:(o + 1) * H, :],
                                preferred_element_type=jnp.float32)       # (2H, 2W)
                    o_ref[b, o * 2 * H:(o + 1) * 2 * H, :] = z.astype(o_ref.dtype)
            else:
                o_ref[b] = y.astype(o_ref.dtype)

    return kernel


def rgb_block_forward(x, prev_rgb, istyle, style_w, style_b, conv_w,
                      *, upsample=True, btile=None):
    """RGBBlock.forward(x, prev_rgb, istyle) with weights passed explicitly.

    x        : [B, C, H, W] float32
    prev_rgb : [B, 3, H, W] float32 or None
    istyle   : [B, L] float32
    style_w  : [C, L]  (nn.Linear weight),  style_b : [C]  (nn.Linear bias)
    conv_w   : [3, C]  (Conv2DMod 1x1 weight, squeezed)
    returns  : [B, 3, 2H, 2W] if upsample else [B, 3, H, W]
    """
    B, C, H, W = x.shape
    L = istyle.shape[1]
    out_c = conv_w.shape[0]
    has_prev = prev_rgb is not None
    h_out, w_out = (2 * H, 2 * W) if upsample else (H, W)

    if btile is None:
        per_sample = 4 * (C * H * W + L
                          + (out_c * H * W if has_prev else 0)
                          + out_c * h_out * w_out)
        btile = _pick_btile(B, per_sample)
    assert B % btile == 0, (B, btile)
    nsteps = B // btile

    # Metadata-only reshapes (no HBM traffic).
    x_rows = x.reshape(B, C * H, W)
    istyle_col = istyle.reshape(B, L, 1)
    style_b_col = style_b.reshape(C, 1)

    # Tiny host-side constants (numpy, baked at trace time).
    e_mat = jnp.asarray(
        np.kron(np.eye(C, dtype=np.float32), np.ones((H, 1), np.float32)))
    # Channel mix folded with the row (H) identity so the 1x1 conv is a single
    # 2-D matmul on the (C*H, W) layout.  Tiny per-call weight preprocessing.
    cwi = jnp.kron(conv_w.astype(jnp.float32), jnp.eye(H, dtype=jnp.float32))

    inputs = [istyle_col, style_w, style_b_col, e_mat, cwi, x_rows]
    in_specs = [
        pl.BlockSpec((btile, L, 1), lambda t: (t, 0, 0)),        # istyle
        pl.BlockSpec((C, L), lambda t: (0, 0)),                  # style_w (invariant)
        pl.BlockSpec((C, 1), lambda t: (0, 0)),                  # style_b (invariant)
        pl.BlockSpec((C * H, C), lambda t: (0, 0)),              # e_mat   (invariant)
        pl.BlockSpec((out_c * H, C * H), lambda t: (0, 0)),      # cwi     (invariant)
        pl.BlockSpec((btile, C * H, W), lambda t: (t, 0, 0)),    # x
    ]

    if has_prev:
        inputs.append(prev_rgb.reshape(B, out_c * H, W))
        in_specs.append(pl.BlockSpec((btile, out_c * H, W), lambda t: (t, 0, 0)))

    if upsample:
        u_w_t = jnp.asarray(_bilinear_up_matrix_np(W).T)   # (W, 2W)
        u_h = jnp.asarray(_bilinear_up_matrix_np(H))       # (2H, H)
        inputs.extend([u_w_t, u_h])
        in_specs.extend([
            pl.BlockSpec((W, 2 * W), lambda t: (0, 0)),          # invariant
            pl.BlockSpec((2 * H, H), lambda t: (0, 0)),          # invariant
        ])

    kernel = _make_rgb_kernel(btile, out_c, H, W, has_prev, upsample)

    out_rows = pl.pallas_call(
        kernel,
        out_shape=jax.ShapeDtypeStruct((B, out_c * h_out, w_out), x.dtype),
        grid=(nsteps,),
        in_specs=in_specs,
        out_specs=pl.BlockSpec((btile, out_c * h_out, w_out), lambda t: (t, 0, 0)),
        compiler_params=pltpu.CompilerParams(
            dimension_semantics=("parallel",),
        ),
    )(*inputs)

    return out_rows.reshape(B, out_c, h_out, w_out)


def rgb_block_reference(x, prev_rgb, istyle, style_w, style_b, conv_w, *, upsample=True):
    """Pure-JAX reference (direct einsum formulation, independent of the
    kron(conv_w, I_H) folding used by the kernel)."""
    B, C, H, W = x.shape
    style = istyle @ style_w.T + style_b                       # [B, C]
    w_mod = conv_w[None, :, :] * (style[:, None, :] + 1.0)     # [B, 3, C]
    y = jnp.einsum("boc,bchw->bohw", w_mod, x)
    if prev_rgb is not None:
        y = y + prev_rgb
    if upsample:
        u_h = jnp.asarray(_bilinear_up_matrix_np(H))
        u_w = jnp.asarray(_bilinear_up_matrix_np(W))
        y = jnp.einsum("Ih,bohw->boIw", u_h, y)
        y = jnp.einsum("Jw,boIw->boIJ", u_w, y)
    return y


if __name__ == "__main__":
    key = jax.random.PRNGKey(0)
    ks = jax.random.split(key, 6)

    B, C, H, W = 2, 4, 16, 16   # batch, input_channel, spatial
    L = 32                      # latent_dim

    x = jax.random.normal(ks[0], (B, C, H, W), jnp.float32)
    prev_rgb = jax.random.normal(ks[1], (B, 3, H, W), jnp.float32)
    istyle = jax.random.normal(ks[2], (B, L), jnp.float32)
    style_w = jax.random.normal(ks[3], (C, L), jnp.float32) * 0.1
    style_b = jax.random.normal(ks[4], (C,), jnp.float32) * 0.1
    conv_w = jax.random.normal(ks[5], (3, C), jnp.float32)

    fwd = jax.jit(rgb_block_forward, static_argnames=("upsample", "btile"))

    # Full path: skip-add + bilinear x2 upsample.
    y = jax.block_until_ready(
        fwd(x, prev_rgb, istyle, style_w, style_b, conv_w, upsample=True))
    y_ref = rgb_block_reference(x, prev_rgb, istyle, style_w, style_b, conv_w,
                                upsample=True)
    assert y.shape == (B, 3, 2 * H, 2 * W), y.shape
    assert jnp.allclose(y, y_ref, atol=1e-2, rtol=1e-2), \
        float(jnp.max(jnp.abs(y - y_ref)))

    # No-prev / no-upsample path.
    y2 = jax.block_until_ready(
        fwd(x, None, istyle, style_w, style_b, conv_w, upsample=False))
    y2_ref = rgb_block_reference(x, None, istyle, style_w, style_b, conv_w,
                                 upsample=False)
    assert y2.shape == (B, 3, H, W), y2.shape
    assert jnp.allclose(y2, y2_ref, atol=1e-2, rtol=1e-2), \
        float(jnp.max(jnp.abs(y2 - y2_ref)))

    print("KERNEL_OK")
</pallas_src>

<mosaic_0001>
module attributes {stable_mosaic.version = 11 : i64} {
  func.func @kernel(%arg0: i32, %arg1: memref<1x32x1xf32, #tpu.memory_space<vmem>>, %arg2: memref<4x32xf32, #tpu.memory_space<vmem>>, %arg3: memref<4x1xf32, #tpu.memory_space<vmem>>, %arg4: memref<64x4xf32, #tpu.memory_space<vmem>>, %arg5: memref<48x64xf32, #tpu.memory_space<vmem>>, %arg6: memref<1x64x16xf32, #tpu.memory_space<vmem>>, %arg7: memref<1x48x16xf32, #tpu.memory_space<vmem>>, %arg8: memref<16x32xf32, #tpu.memory_space<vmem>>, %arg9: memref<32x16xf32, #tpu.memory_space<vmem>>, %arg10: memref<1x96x32xf32, #tpu.memory_space<vmem>>) attributes {dimension_semantics = [#tpu.dimension_semantics<parallel>], iteration_bounds = array<i64: 2>, scalar_prefetch = 0 : i64, scratch_operands = 0 : i64, tpu.core_type = #tpu.core_type<tc>, window_params = [{transform_indices = @transform_0, window_bounds = array<i64: 1, 32, 1>}, {pipeline_mode = #tpu.pipeline_mode<synchronous>, transform_indices = @transform_1, window_bounds = array<i64: 4, 32>}, {pipeline_mode = #tpu.pipeline_mode<synchronous>, transform_indices = @transform_2, window_bounds = array<i64: 4, 1>}, {pipeline_mode = #tpu.pipeline_mode<synchronous>, transform_indices = @transform_3, window_bounds = array<i64: 64, 4>}, {pipeline_mode = #tpu.pipeline_mode<synchronous>, transform_indices = @transform_4, window_bounds = array<i64: 48, 64>}, {transform_indices = @transform_5, window_bounds = array<i64: 1, 64, 16>}, {transform_indices = @transform_6, window_bounds = array<i64: 1, 48, 16>}, {pipeline_mode = #tpu.pipeline_mode<synchronous>, transform_indices = @transform_7, window_bounds = array<i64: 16, 32>}, {pipeline_mode = #tpu.pipeline_mode<synchronous>, transform_indices = @transform_8, window_bounds = array<i64: 32, 16>}, {transform_indices = @transform_9, window_bounds = array<i64: 1, 96, 32>}]} {
    %c0 = arith.constant 0 : index
    %c0_0 = arith.constant 0 : index
    %0 = vector.load %arg2[%c0, %c0_0] : memref<4x32xf32, #tpu.memory_space<vmem>>, vector<4x32xf32>
    %c0_1 = arith.constant 0 : index
    %c0_2 = arith.constant 0 : index
    %1 = vector.load %arg3[%c0_1, %c0_2] : memref<4x1xf32, #tpu.memory_space<vmem>>, vector<4x1xf32>
    %c0_3 = arith.constant 0 : index
    %c0_4 = arith.constant 0 : index
    %2 = vector.load %arg4[%c0_3, %c0_4] : memref<64x4xf32, #tpu.memory_space<vmem>>, vector<64x4xf32>
    %c0_5 = arith.constant 0 : index
    %c0_6 = arith.constant 0 : index
    %3 = vector.load %arg5[%c0_5, %c0_6] : memref<48x64xf32, #tpu.memory_space<vmem>>, vector<48x64xf32>
    %c0_7 = arith.constant 0 : index
    %c0_8 = arith.constant 0 : index
    %4 = vector.load %arg8[%c0_7, %c0_8] : memref<16x32xf32, #tpu.memory_space<vmem>>, vector<16x32xf32>
    %c0_9 = arith.constant 0 : index
    %c0_10 = arith.constant 0 : index
    %5 = vector.load %arg9[%c0_9, %c0_10] : memref<32x16xf32, #tpu.memory_space<vmem>>, vector<32x16xf32>
    %c0_11 = arith.constant 0 : index
    %c0_12 = arith.constant 0 : index
    %c0_13 = arith.constant 0 : index
    %6 = vector.load %arg1[%c0_11, %c0_12, %c0_13] : memref<1x32x1xf32, #tpu.memory_space<vmem>>, vector<1x32x1xf32>
    %7 = vector.shape_cast %6 : vector<1x32x1xf32> to vector<32x1xf32>
    %cst = arith.constant dense<0.000000e+00> : vector<4x1xf32>
    %8 = tpu.matmul %0, %7, %cst {dimension_numbers = #tpu.dot_dimension_numbers<[1], [0], [0], [1], [0, 0, 1, 1], [], []>} : vector<4x32xf32>, vector<32x1xf32>, vector<4x1xf32> -> vector<4x1xf32>
    %9 = arith.addf %8, %1 : vector<4x1xf32>
    %cst_14 = arith.constant dense<0.000000e+00> : vector<64x1xf32>
    %10 = tpu.matmul %2, %9, %cst_14 {dimension_numbers = #tpu.dot_dimension_numbers<[1], [0], [0], [1], [0, 0, 1, 1], [], []>} : vector<64x4xf32>, vector<4x1xf32>, vector<64x1xf32> -> vector<64x1xf32>
    %cst_15 = arith.constant 1.000000e+00 : f32
    %11 = vector.broadcast %cst_15 : f32 to vector<64x1xf32>
    %12 = arith.addf %10, %11 : vector<64x1xf32>
    %c0_16 = arith.constant 0 : index
    %c0_17 = arith.constant 0 : index
    %c0_18 = arith.constant 0 : index
    %13 = vector.load %arg6[%c0_16, %c0_17, %c0_18] : memref<1x64x16xf32, #tpu.memory_space<vmem>>, vector<1x64x16xf32>
    %14 = vector.shape_cast %13 : vector<1x64x16xf32> to vector<64x16xf32>
    %15 = vector.broadcast %12 : vector<64x1xf32> to vector<64x16xf32>
    %16 = arith.mulf %14, %15 : vector<64x16xf32>
    %cst_19 = arith.constant dense<0.000000e+00> : vector<48x16xf32>
    %17 = tpu.matmul %3, %16, %cst_19 {dimension_numbers = #tpu.dot_dimension_numbers<[1], [0], [0], [1], [0, 0, 1, 1], [], []>} : vector<48x64xf32>, vector<64x16xf32>, vector<48x16xf32> -> vector<48x16xf32>
    %c0_20 = arith.constant 0 : index
    %c0_21 = arith.constant 0 : index
    %c0_22 = arith.constant 0 : index
    %18 = vector.load %arg7[%c0_20, %c0_21, %c0_22] : memref<1x48x16xf32, #tpu.memory_space<vmem>>, vector<1x48x16xf32>
    %19 = vector.shape_cast %18 : vector<1x48x16xf32> to vector<48x16xf32>
    %20 = arith.addf %17, %19 : vector<48x16xf32>
    %cst_23 = arith.constant dense<0.000000e+00> : vector<48x32xf32>
    %21 = tpu.matmul %20, %4, %cst_23 {dimension_numbers = #tpu.dot_dimension_numbers<[1], [0], [0], [1], [0, 0, 1, 1], [], []>} : vector<48x16xf32>, vector<16x32xf32>, vector<48x32xf32> -> vector<48x32xf32>
    %22 = vector.extract_strided_slice %21 {offsets = [0, 0], sizes = [16, 32], strides = [1, 1]} : vector<48x32xf32> to vector<16x32xf32>
    %cst_24 = arith.constant dense<0.000000e+00> : vector<32x32xf32>
    %23 = tpu.matmul %5, %22, %cst_24 {dimension_numbers = #tpu.dot_dimension_numbers<[1], [0], [0], [1], [0, 0, 1, 1], [], []>} : vector<32x16xf32>, vector<16x32xf32>, vector<32x32xf32> -> vector<32x32xf32>
    %c0_25 = arith.constant 0 : index
    %c0_26 = arith.constant 0 : index
    %c0_27 = arith.constant 0 : index
    %24 = vector.load %arg10[%c0_25, %c0_26, %c0_27] : memref<1x96x32xf32, #tpu.memory_space<vmem>>, vector<1x32x32xf32>
    %25 = vector.shape_cast %24 : vector<1x32x32xf32> to vector<32x32xf32>
    %26 = vector.shape_cast %23 : vector<32x32xf32> to vector<1x32x32xf32>
    tpu.vector_store %arg10[%c0_25, %c0_26, %c0_27], %26 {strides = array<i32>} : memref<1x96x32xf32, #tpu.memory_space<vmem>>, vector<1x32x32xf32>,
    %27 = vector.extract_strided_slice %21 {offsets = [16, 0], sizes = [16, 32], strides = [1, 1]} : vector<48x32xf32> to vector<16x32xf32>
    %cst_28 = arith.constant dense<0.000000e+00> : vector<32x32xf32>
    %28 = tpu.matmul %5, %27, %cst_28 {dimension_numbers = #tpu.dot_dimension_numbers<[1], [0], [0], [1], [0, 0, 1, 1], [], []>} : vector<32x16xf32>, vector<16x32xf32>, vector<32x32xf32> -> vector<32x32xf32>
    %c0_29 = arith.constant 0 : index
    %c32 = arith.constant 32 : index
    %c0_30 = arith.constant 0 : index
    %29 = vector.load %arg10[%c0_29, %c32, %c0_30] : memref<1x96x32xf32, #tpu.memory_space<vmem>>, vector<1x32x32xf32>
    %30 = vector.shape_cast %29 : vector<1x32x32xf32> to vector<32x32xf32>
    %31 = vector.shape_cast %28 : vector<32x32xf32> to vector<1x32x32xf32>
    tpu.vector_store %arg10[%c0_29, %c32, %c0_30], %31 {strides = array<i32>} : memref<1x96x32xf32, #tpu.memory_space<vmem>>, vector<1x32x32xf32>,
    %32 = vector.extract_strided_slice %21 {offsets = [32, 0], sizes = [16, 32], strides = [1, 1]} : vector<48x32xf32> to vector<16x32xf32>
    %cst_31 = arith.constant dense<0.000000e+00> : vector<32x32xf32>
    %33 = tpu.matmul %5, %32, %cst_31 {dimension_numbers = #tpu.dot_dimension_numbers<[1], [0], [0], [1], [0, 0, 1, 1], [], []>} : vector<32x16xf32>, vector<16x32xf32>, vector<32x32xf32> -> vector<32x32xf32>
    %c0_32 = arith.constant 0 : index
    %c64 = arith.constant 64 : index
    %c0_33 = arith.constant 0 : index
    %34 = vector.load %arg10[%c0_32, %c64, %c0_33] : memref<1x96x32xf32, #tpu.memory_space<vmem>>, vector<1x32x32xf32>
    %35 = vector.shape_cast %34 : vector<1x32x32xf32> to vector<32x32xf32>
    %36 = vector.shape_cast %33 : vector<32x32xf32> to vector<1x32x32xf32>
    tpu.vector_store %arg10[%c0_32, %c64, %c0_33], %36 {strides = array<i32>} : memref<1x96x32xf32, #tpu.memory_space<vmem>>, vector<1x32x32xf32>,
    return
  }
  func.func @transform_0(%arg0: i32) -> (i32, i32, i32) {
    %c0_i32 = arith.constant 0 : i32
    %c0_i32_0 = arith.constant 0 : i32
    %c0_i32_1 = arith.constant 0 : i32
    return %arg0, %c0_i32, %c0_i32_0 : i32, i32, i32
  }
  func.func @transform_1(%arg0: i32) -> (i32, i32) {
    %c0_i32 = arith.constant 0 : i32
    %c0_i32_0 = arith.constant 0 : i32
    %c0_i32_1 = arith.constant 0 : i32
    return %c0_i32, %c0_i32_0 : i32, i32
  }
  func.func @transform_2(%arg0: i32) -> (i32, i32) {
    %c0_i32 = arith.constant 0 : i32
    %c0_i32_0 = arith.constant 0 : i32
    %c0_i32_1 = arith.constant 0 : i32
    return %c0_i32, %c0_i32_0 : i32, i32
  }
  func.func @transform_3(%arg0: i32) -> (i32, i32) {
    %c0_i32 = arith.constant 0 : i32
    %c0_i32_0 = arith.constant 0 : i32
    %c0_i32_1 = arith.constant 0 : i32
    return %c0_i32, %c0_i32_0 : i32, i32
  }
  func.func @transform_4(%arg0: i32) -> (i32, i32) {
    %c0_i32 = arith.constant 0 : i32
    %c0_i32_0 = arith.constant 0 : i32
    %c0_i32_1 = arith.constant 0 : i32
    return %c0_i32, %c0_i32_0 : i32, i32
  }
  func.func @transform_5(%arg0: i32) -> (i32, i32, i32) {
    %c0_i32 = arith.constant 0 : i32
    %c0_i32_0 = arith.constant 0 : i32
    %c0_i32_1 = arith.constant 0 : i32
    return %arg0, %c0_i32, %c0_i32_0 : i32, i32, i32
  }
  func.func @transform_6(%arg0: i32) -> (i32, i32, i32) {
    %c0_i32 = arith.constant 0 : i32
    %c0_i32_0 = arith.constant 0 : i32
    %c0_i32_1 = arith.constant 0 : i32
    return %arg0, %c0_i32, %c0_i32_0 : i32, i32, i32
  }
  func.func @transform_7(%arg0: i32) -> (i32, i32) {
    %c0_i32 = arith.constant 0 : i32
    %c0_i32_0 = arith.constant 0 : i32
    %c0_i32_1 = arith.constant 0 : i32
    return %c0_i32, %c0_i32_0 : i32, i32
  }
  func.func @transform_8(%arg0: i32) -> (i32, i32) {
    %c0_i32 = arith.constant 0 : i32
    %c0_i32_0 = arith.constant 0 : i32
    %c0_i32_1 = arith.constant 0 : i32
    return %c0_i32, %c0_i32_0 : i32, i32
  }
  func.func @transform_9(%arg0: i32) -> (i32, i32, i32) {
    %c0_i32 = arith.constant 0 : i32
    %c0_i32_0 = arith.constant 0 : i32
    %c0_i32_1 = arith.constant 0 : i32
    return %arg0, %c0_i32, %c0_i32_0 : i32, i32, i32
  }
}

</mosaic_0001>

<llo_original>
// kernel: rgb_block_forward.1
$region0: #{rgb_block_forward.1}
  #allocation0 [shape = 'u32[]', space=smem, size = 0x4, offset = 0x4, fixed_abs, tag = 'smem constant byte address 0x4 - core index']
  #allocation1 [shape = 'u32[144,128]{1,0:T(1,128)}', space=vmem, size = 0x12000, scoped, tag = 'internal scratch']
  %s0 = inlined_call_operand.vmem [shape: f32[2,32,1], index: 0, kind: input, shape index: {}]
  %s1 = inlined_call_operand.vmem [shape: f32[4,32], index: 1, kind: input, shape index: {}]
  %s2 = inlined_call_operand.vmem [shape: f32[4,1], index: 2, kind: input, shape index: {}]
  %s3 = inlined_call_operand.vmem [shape: f32[64,4], index: 3, kind: input, shape index: {}]
  %s4 = inlined_call_operand.vmem [shape: f32[48,64], index: 4, kind: input, shape index: {}]
  %s5 = inlined_call_operand.vmem [shape: f32[2,64,16], index: 5, kind: input, shape index: {}]
  %s6 = inlined_call_operand.vmem [shape: f32[2,48,16], index: 6, kind: input, shape index: {}]
  %s7 = inlined_call_operand.vmem [shape: f32[16,32], index: 7, kind: input, shape index: {}]
  %s8 = inlined_call_operand.vmem [shape: f32[32,16], index: 8, kind: input, shape index: {}]
  %s9 = inlined_call_operand.hbm [shape: f32[2,96,32], index: 9, kind: output, shape index: {}]
  %s10 = sld [smem:[#allocation0]]
  $region69: #{rgb_block_forward.1} parent=0
    _
  %s12 = ssub.s32 1, %s10
  %s13 = scalar_select 0, %s12, %s10
  $region1: #{rgb_block_forward.1} parent=0
    #allocation2 [shape = 'u8[98304]{0}', space=vmem, size = 0x18000, scoped, tag = 'output window, operand 0']
    #allocation3 [shape = 's32[2]{0}', space=sflag, size = 0x8, scoped, tag = 'scoped memory for rgb_block_forward.1']
    %14 = vsyncpa [#allocation3], 0
    %s15 = scalar_lea.sflag [#allocation3], 1
    %16 = vsyncpa %s15, 0
    loop: start=0, step=1, limit=4
    $region2: #{rgb_block_forward.1} parent=1 // loop_pre_header
      _
    $region3: #{rgb_block_forward.1} parent=1 // loop_header
      %s18 = sphi 0, %s22
      %p19 = scmp.ge.s32.totalorder %s18, 4
      %s28 = sphi 0, %s30
      %s31 = sphi 0, %s28
      %s32 = sphi 0, %s31
      %s48 = sphi 0, %s32
      %s52 = sphi 0, %s52
      %s54 = sphi 0, %s52
      %s55 = sphi 0, %s54
      %s69 = sphi 0, %s55
      %s73 = sphi 0, %s73
      %s75 = sphi 0, %s73
      %s76 = sphi 0, %s75
      %s90 = sphi 0, %s76
      %s94 = sphi 0, %s94
      %s96 = sphi 0, %s94
      %s97 = sphi 0, %s96
      %s111 = sphi 0, %s97
      %s115 = sphi 0, %s115
      %s117 = sphi 0, %s115
      %s118 = sphi 0, %s117
      %s132 = sphi 0, %s118
      %s138 = sphi 0, %s140
      %s141 = sphi 0, %s138
      %s142 = sphi 0, %s141
      %s158 = sphi 0, %s142
      %s164 = sphi 0, %s166
      %s167 = sphi 0, %s164
      %s168 = sphi 0, %s167
      %s184 = sphi 0, %s168
      %s188 = sphi 0, %s188
      %s190 = sphi 0, %s188
      %s191 = sphi 0, %s190
      %s205 = sphi 0, %s191
      %s209 = sphi 0, %s209
      %s211 = sphi 0, %s209
      %s212 = sphi 0, %s211
      %s226 = sphi 0, %s212
      %s232 = sphi 0, %s234
      %s235 = sphi 0, %s232
      %s236 = sphi 0, %s235
      %s252 = sphi 0, %s236
    $region4: #{rgb_block_forward.1} parent=1 // loop_header_branch
      %21 = sbr.rel (%p19) target = $region8
    $region5: #{rgb_block_forward.1} parent=1 // loop_body
      %s23 = ssub.s32 %s18, 1
      %s24 = ssub.s32 %s18, 2
      %s25 = sadd.s32 %s18, 1
      %s26 = ssub.s32 %s18, %s25
      %p27 = scmp.eq.s32.totalorder %s26, 0
      %s29 = sadd.s32 %s28, 1
      %s30 = scalar_select %p27, %s28, %s29
      %p33 = pneg %p27
      %p34 = scmp.eq.s32.totalorder %s18, 1
      %p35 = por %p33, %p34
      %p36 = scmp.ne.s32.totalorder %s28, %s31
      %p37 = scmp.eq.s32.totalorder %s18, 0
      %p38 = por %p36, %p37
      %p39 = scmp.ne.s32.totalorder %s28, %s31
      %p40 = scmp.eq.s32.totalorder %s23, 1
      %p41 = por %p39, %p40
      %p42 = scmp.ne.s32.totalorder %s31, %s32
      %p43 = scmp.eq.s32.totalorder %s23, 0
      %p44 = por %p42, %p43
      %p45 = scmp.ne.s32.totalorder %s31, %s32
      %p46 = scmp.eq.s32.totalorder %s24, 1
      %p47 = por %p45, %p46
      %p49 = scmp.ne.s32.totalorder %s32, %s48
      %p50 = scmp.eq.s32.totalorder %s24, 0
      %p51 = por %p49, %p50
      %s53 = sadd.s32 %s52, 1
      %p56 = scmp.eq.s32.totalorder %s18, 1
      %p57 = scmp.ne.s32.totalorder %s52, %s54
      %p58 = scmp.eq.s32.totalorder %s18, 0
      %p59 = por %p57, %p58
      %p60 = scmp.ne.s32.totalorder %s52, %s54
      %p61 = scmp.eq.s32.totalorder %s23, 1
      %p62 = por %p60, %p61
      %p63 = scmp.ne.s32.totalorder %s54, %s55
      %p64 = scmp.eq.s32.totalorder %s23, 0
      %p65 = por %p63, %p64
      %p66 = scmp.ne.s32.totalorder %s54, %s55
      %p67 = scmp.eq.s32.totalorder %s24, 1
      %p68 = por %p66, %p67
      %p70 = scmp.ne.s32.totalorder %s55, %s69
      %p71 = scmp.eq.s32.totalorder %s24, 0
      %p72 = por %p70, %p71
      %s74 = sadd.s32 %s73, 1
      %p77 = scmp.eq.s32.totalorder %s18, 1
      %p78 = scmp.ne.s32.totalorder %s73, %s75
      %p79 = scmp.eq.s32.totalorder %s18, 0
      %p80 = por %p78, %p79
      %p81 = scmp.ne.s32.totalorder %s73, %s75
      %p82 = scmp.eq.s32.totalorder %s23, 1
      %p83 = por %p81, %p82
      %p84 = scmp.ne.s32.totalorder %s75, %s76
      %p85 = scmp.eq.s32.totalorder %s23, 0
      %p86 = por %p84, %p85
      %p87 = scmp.ne.s32.totalorder %s75, %s76
      %p88 = scmp.eq.s32.totalorder %s24, 1
      %p89 = por %p87, %p88
      %p91 = scmp.ne.s32.totalorder %s76, %s90
      %p92 = scmp.eq.s32.totalorder %s24, 0
      %p93 = por %p91, %p92
      %s95 = sadd.s32 %s94, 1
      %p98 = scmp.eq.s32.totalorder %s18, 1
      %p99 = scmp.ne.s32.totalorder %s94, %s96
      %p100 = scmp.eq.s32.totalorder %s18, 0
      %p101 = por %p99, %p100
      %p102 = scmp.ne.s32.totalorder %s94, %s96
      %p103 = scmp.eq.s32.totalorder %s23, 1
      %p104 = por %p102, %p103
      %p105 = scmp.ne.s32.totalorder %s96, %s97
      %p106 = scmp.eq.s32.totalorder %s23, 0
      %p107 = por %p105, %p106
      %p108 = scmp.ne.s32.totalorder %s96, %s97
      %p109 = scmp.eq.s32.totalorder %s24, 1
      %p110 = por %p108, %p109
      %p112 = scmp.ne.s32.totalorder %s97, %s111
      %p113 = scmp.eq.s32.totalorder %s24, 0
      %p114 = por %p112, %p113
      %s116 = sadd.s32 %s115, 1
      %p119 = scmp.eq.s32.totalorder %s18, 1
      %p120 = scmp.ne.s32.totalorder %s115, %s117
      %p121 = scmp.eq.s32.totalorder %s18, 0
      %p122 = por %p120, %p121
      %p123 = scmp.ne.s32.totalorder %s115, %s117
      %p124 = scmp.eq.s32.totalorder %s23, 1
      %p125 = por %p123, %p124
      %p126 = scmp.ne.s32.totalorder %s117, %s118
      %p127 = scmp.eq.s32.totalorder %s23, 0
      %p128 = por %p126, %p127
      %p129 = scmp.ne.s32.totalorder %s117, %s118
      %p130 = scmp.eq.s32.totalorder %s24, 1
      %p131 = por %p129, %p130
      %p133 = scmp.ne.s32.totalorder %s118, %s132
      %p134 = scmp.eq.s32.totalorder %s24, 0
      %p135 = por %p133, %p134
      %s136 = ssub.s32 %s18, %s25
      %p137 = scmp.eq.s32.totalorder %s136, 0
      %s139 = sadd.s32 %s138, 1
      %s140 = scalar_select %p137, %s138, %s139
      %p143 = pneg %p137
      %p144 = scmp.eq.s32.totalorder %s18, 1
      %p145 = por %p143, %p144
      %p146 = scmp.ne.s32.totalorder %s138, %s141
      %p147 = scmp.eq.s32.totalorder %s18, 0
      %p148 = por %p146, %p147
      %p149 = scmp.ne.s32.totalorder %s138, %s141
      %p150 = scmp.eq.s32.totalorder %s23, 1
      %p151 = por %p149, %p150
      %p152 = scmp.ne.s32.totalorder %s141, %s142
      %p153 = scmp.eq.s32.totalorder %s23, 0
      %p154 = por %p152, %p153
      %p155 = scmp.ne.s32.totalorder %s141, %s142
      %p156 = scmp.eq.s32.totalorder %s24, 1
      %p157 = por %p155, %p156
      %p159 = scmp.ne.s32.totalorder %s142, %s158
      %p160 = scmp.eq.s32.totalorder %s24, 0
      %p161 = por %p159, %p160
      %s162 = ssub.s32 %s18, %s25
      %p163 = scmp.eq.s32.totalorder %s162, 0
      %s165 = sadd.s32 %s164, 1
      %s166 = scalar_select %p163, %s164, %s165
      %p169 = pneg %p163
      %p170 = scmp.eq.s32.totalorder %s18, 1
      %p171 = por %p169, %p170
      %p172 = scmp.ne.s32.totalorder %s164, %s167
      %p173 = scmp.eq.s32.totalorder %s18, 0
      %p174 = por %p172, %p173
      %p175 = scmp.ne.s32.totalorder %s164, %s167
      %p176 = scmp.eq.s32.totalorder %s23, 1
      %p177 = por %p175, %p176
      %p178 = scmp.ne.s32.totalorder %s167, %s168
      %p179 = scmp.eq.s32.totalorder %s23, 0
      %p180 = por %p178, %p179
      %p181 = scmp.ne.s32.totalorder %s167, %s168
      %p182 = scmp.eq.s32.totalorder %s24, 1
      %p183 = por %p181, %p182
      %p185 = scmp.ne.s32.totalorder %s168, %s184
      %p186 = scmp.eq.s32.totalorder %s24, 0
      %p187 = por %p185, %p186
      %s189 = sadd.s32 %s188, 1
      %p192 = scmp.eq.s32.totalorder %s18, 1
      %p193 = scmp.ne.s32.totalorder %s188, %s190
      %p194 = scmp.eq.s32.totalorder %s18, 0
      %p195 = por %p193, %p194
      %p196 = scmp.ne.s32.totalorder %s188, %s190
      %p197 = scmp.eq.s32.totalorder %s23, 1
      %p198 = por %p196, %p197
      %p199 = scmp.ne.s32.totalorder %s190, %s191
      %p200 = scmp.eq.s32.totalorder %s23, 0
      %p201 = por %p199, %p200
      %p202 = scmp.ne.s32.totalorder %s190, %s191
      %p203 = scmp.eq.s32.totalorder %s24, 1
      %p204 = por %p202, %p203
      %p206 = scmp.ne.s32.totalorder %s191, %s205
      %p207 = scmp.eq.s32.totalorder %s24, 0
      %p208 = por %p206, %p207
      %s210 = sadd.s32 %s209, 1
      %p213 = scmp.eq.s32.totalorder %s18, 1
      %p214 = scmp.ne.s32.totalorder %s209, %s211
      %p215 = scmp.eq.s32.totalorder %s18, 0
      %p216 = por %p214, %p215
      %p217 = scmp.ne.s32.totalorder %s209, %s211
      %p218 = scmp.eq.s32.totalorder %s23, 1
      %p219 = por %p217, %p218
      %p220 = scmp.ne.s32.totalorder %s211, %s212
      %p221 = scmp.eq.s32.totalorder %s23, 0
      %p222 = por %p220, %p221
      %p223 = scmp.ne.s32.totalorder %s211, %s212
      %p224 = scmp.eq.s32.totalorder %s24, 1
      %p225 = por %p223, %p224
      %p227 = scmp.ne.s32.totalorder %s212, %s226
      %p228 = scmp.eq.s32.totalorder %s24, 0
      %p229 = por %p227, %p228
      %s230 = ssub.s32 %s18, %s25
      %p231 = scmp.eq.s32.totalorder %s230, 0
      %s233 = sadd.s32 %s232, 1
      %s234 = scalar_select %p231, %s232, %s233
      %p237 = pneg %p231
      %p238 = scmp.eq.s32.totalorder %s18, 1
      %p239 = por %p237, %p238
      %p240 = scmp.ne.s32.totalorder %s232, %s235
      %p241 = scmp.eq.s32.totalorder %s18, 0
      %p242 = por %p240, %p241
      %p243 = scmp.ne.s32.totalorder %s232, %s235
      %p244 = scmp.eq.s32.totalorder %s23, 1
      %p245 = por %p243, %p244
      %p246 = scmp.ne.s32.totalorder %s235, %s236
      %p247 = scmp.eq.s32.totalorder %s23, 0
      %p248 = por %p246, %p247
      %p249 = scmp.ne.s32.totalorder %s235, %s236
      %p250 = scmp.eq.s32.totalorder %s24, 1
      %p251 = por %p249, %p250
      %p253 = scmp.ne.s32.totalorder %s236, %s252
      %p254 = scmp.eq.s32.totalorder %s24, 0
      %p255 = por %p253, %p254
      %p256 = scmp.le.s32.totalorder 1, %s18
      %p257 = scmp.lt.s32.totalorder %s18, 3
      %p258 = pnand %p256, %p257
      %p259 = pneg %p258
      // Predicated region
      $region9: #{rgb_block_forward.1} parent=5 // pred_check
        _
      $region10: #{rgb_block_forward.1} parent=5 // pred_check_branch
        %261 = sbr.rel (%p258) target = $region12
      $region11: #{rgb_block_forward.1} parent=5 // pred_region
        %s262 = ssub.s32 %s18, 1
        // Predicated region
        $region13: #{rgb_block_forward.1} parent=11 // pred_check
          %p263 = pneg %p65
        $region14: #{rgb_block_forward.1} parent=11 // pred_check_branch
          %265 = sbr.rel (%p263) target = $region16
        $region15: #{rgb_block_forward.1} parent=11 // pred_region
          _
        $region16: #{rgb_block_forward.1} parent=11 // pred_fallthru
          _
        // Predicated region
        $region17: #{rgb_block_forward.1} parent=11 // pred_check
          %p266 = pneg %p86
        $region18: #{rgb_block_forward.1} parent=11 // pred_check_branch
          %268 = sbr.rel (%p266) target = $region20
        $region19: #{rgb_block_forward.1} parent=11 // pred_region
          _
        $region20: #{rgb_block_forward.1} parent=11 // pred_fallthru
          _
        // Predicated region
        $region21: #{rgb_block_forward.1} parent=11 // pred_check
          %p269 = pneg %p107
        $region22: #{rgb_block_forward.1} parent=11 // pred_check_branch
          %271 = sbr.rel (%p269) target = $region24
        $region23: #{rgb_block_forward.1} parent=11 // pred_region
          _
        $region24: #{rgb_block_forward.1} parent=11 // pred_fallthru
          _
        // Predicated region
        $region25: #{rgb_block_forward.1} parent=11 // pred_check
          %p272 = pneg %p128
        $region26: #{rgb_block_forward.1} parent=11 // pred_check_branch
          %274 = sbr.rel (%p272) target = $region28
        $region27: #{rgb_block_forward.1} parent=11 // pred_region
          _
        $region28: #{rgb_block_forward.1} parent=11 // pred_fallthru
          _
        // Predicated region
        $region29: #{rgb_block_forward.1} parent=11 // pred_check
          %p275 = pneg %p201
        $region30: #{rgb_block_forward.1} parent=11 // pred_check_branch
          %277 = sbr.rel (%p275) target = $region32
        $region31: #{rgb_block_forward.1} parent=11 // pred_region
          _
        $region32: #{rgb_block_forward.1} parent=11 // pred_fallthru
          _
        // Predicated region
        $region33: #{rgb_block_forward.1} parent=11 // pred_check
          %p278 = pneg %p222
        $region34: #{rgb_block_forward.1} parent=11 // pred_check_branch
          %280 = sbr.rel (%p278) target = $region36
        $region35: #{rgb_block_forward.1} parent=11 // pred_region
          _
        $region36: #{rgb_block_forward.1} parent=11 // pred_fallthru
          _
      $region12: #{rgb_block_forward.1} parent=5 // pred_fallthru
        _
      %p281 = scmp.lt.s32.totalorder %s18, 2
      // Predicated region
      $region37: #{rgb_block_forward.1} parent=5 // pred_check
        %p282 = pneg %p281
      $region38: #{rgb_block_forward.1} parent=5 // pred_check_branch
        %284 = sbr.rel (%p282) target = $region40
      $region39: #{rgb_block_forward.1} parent=5 // pred_region
        // Predicated region
        $region41: #{rgb_block_forward.1} parent=39 // pred_check
          %p285 = pneg %p38
        $region42: #{rgb_block_forward.1} parent=39 // pred_check_branch
          %287 = sbr.rel (%p285) target = $region44
        $region43: #{rgb_block_forward.1} parent=39 // pred_region
          %p288 = scmp.lt.s32.totalorder %s18, 1
          %s289 = scalar_select %p288, %s18, 1
          %s290 = smul.addr %s289, 4
          %s291 = smul.addr %s290, 8
          %s292 = scalar_lea.vmem %s0, %s291
        $region44: #{rgb_block_forward.1} parent=39 // pred_fallthru
          _
        // Predicated region
        $region45: #{rgb_block_forward.1} parent=39 // pred_check
          %p293 = pneg %p148
        $region46: #{rgb_block_forward.1} parent=39 // pred_check_branch
          %295 = sbr.rel (%p293) target = $region48
        $region47: #{rgb_block_forward.1} parent=39 // pred_region
          %p296 = scmp.lt.s32.totalorder %s18, 1
          %s297 = scalar_select %p296, %s18, 1
          %s298 = smul.addr %s297, 8
          %s299 = smul.addr %s298, 8
          %s300 = scalar_lea.vmem %s5, %s299
        $region48: #{rgb_block_forward.1} parent=39 // pred_fallthru
          _
        // Predicated region
        $region49: #{rgb_block_forward.1} parent=39 // pred_check
          %p301 = pneg %p174
        $region50: #{rgb_block_forward.1} parent=39 // pred_check_branch
          %303 = sbr.rel (%p301) target = $region52
        $region51: #{rgb_block_forward.1} parent=39 // pred_region
          %p304 = scmp.lt.s32.totalorder %s18, 1
          %s305 = scalar_select %p304, %s18, 1
          %s306 = smul.addr %s305, 6
          %s307 = smul.addr %s306, 8
          %s308 = scalar_lea.vmem %s6, %s307
        $region52: #{rgb_block_forward.1} parent=39 // pred_fallthru
          _
      $region40: #{rgb_block_forward.1} parent=5 // pred_fallthru
        _
      %p309 = scmp.le.s32.totalorder 1, %s18
      %p310 = scmp.lt.s32.totalorder %s18, 3
      %p311 = pnand %p309, %p310
      %p312 = pneg %p311
      // Predicated region
      $region53: #{rgb_block_forward.1} parent=5 // pred_check
        _
      $region54: #{rgb_block_forward.1} parent=5 // pred_check_branch
        %314 = sbr.rel (%p311) target = $region56
      $region55: #{rgb_block_forward.1} parent=5 // pred_region
        %s315 = ssub.s32 %s18, 1
        %p316 = scmp.lt.s32.totalorder %s23, 1
        %s317 = scalar_select %p316, %s23, 1
        %s318 = smul.addr %s317, 4
        %s319 = smul.addr %s318, 8
        %s320 = scalar_lea.vmem %s0, %s319
        %p321 = pneg %p44
        %p322 = pneg %p41
        %p323 = pneg %p65
        %p324 = pneg %p62
        %p325 = pneg %p86
        %p326 = pneg %p83
        %p327 = pneg %p107
        %p328 = pneg %p104
        %p329 = pneg %p128
        %p330 = pneg %p125
        %p331 = scmp.lt.s32.totalorder %s23, 1
        %s332 = scalar_select %p331, %s23, 1
        %s333 = smul.addr %s332, 8
        %s334 = smul.addr %s333, 8
        %s335 = scalar_lea.vmem %s5, %s334
        %p336 = pneg %p154
        %p337 = pneg %p151
        %p338 = scmp.lt.s32.totalorder %s23, 1
        %s339 = scalar_select %p338, %s23, 1
        %s340 = smul.addr %s339, 6
        %s341 = smul.addr %s340, 8
        %s342 = scalar_lea.vmem %s6, %s341
        %p343 = pneg %p180
        %p344 = pneg %p177
        %p345 = pneg %p201
        %p346 = pneg %p198
        %p347 = pneg %p222
        %p348 = pneg %p219
        %p349 = pneg %p248
        %p350 = pneg %p245
        %s351 = sand.u32 %s235, 1
        %s352 = scalar_lea.sflag [#allocation3], %s351
        %s353 = sand.u32 %s235, 1
        %s354 = smul.addr %s353, 96
        %s355 = scalar_lea.vmem [#allocation2], %s354
        %p356 = scmp.lt.s32.totalorder %s23, 1
        %s357 = scalar_select %p356, %s23, 1
        %s358 = smul.addr %s357, 4
        %s359 = smul.addr %s358, 8
        %s360 = scalar_lea.vmem %s0, %s359
        %p361 = scmp.lt.s32.totalorder %s23, 1
        %s362 = scalar_select %p361, %s23, 1
        %s363 = smul.addr %s362, 8
        %s364 = smul.addr %s363, 8
        %s365 = scalar_lea.vmem %s5, %s364
        %p366 = scmp.lt.s32.totalorder %s23, 1
        %s367 = scalar_select %p366, %s23, 1
        %s368 = smul.addr %s367, 6
        %s369 = smul.addr %s368, 8
        %s370 = scalar_lea.vmem %s6, %s369
        %v371 = vld [vmem:[%s1] sm:$0xf]
        %v372 = vld [vmem:[%s2] sm:$0xf]
        %v373 = vld [vmem:[%s3] sm:$0xff]
        %v374 = vld [vmem:[%s3 + $0x8] sm:$0xff]
        %v375 = vld [vmem:[%s3 + $0x10] sm:$0xff]
        %v376 = vld [vmem:[%s3 + $0x18] sm:$0xff]
        %v377 = vld [vmem:[%s3 + $0x20] sm:$0xff]
        %v378 = vld [vmem:[%s3 + $0x28] sm:$0xff]
        %v379 = vld [vmem:[%s3 + $0x30] sm:$0xff]
        %v380 = vld [vmem:[%s3 + $0x38] sm:$0xff]
        %v381 = vld [vmem:[%s4] sm:$0xff]
        %v382 = vld [vmem:[%s4 + $0x8] sm:$0xff]
        %v383 = vld [vmem:[%s4 + $0x10] sm:$0xff]
        %v384 = vld [vmem:[%s4 + $0x18] sm:$0xff]
        %v385 = vld [vmem:[%s4 + $0x20] sm:$0xff]
        %v386 = vld [vmem:[%s4 + $0x28] sm:$0xff]
        %v387 = vld [vmem:[%s7] sm:$0xff]
        %v388 = vld [vmem:[%s7 + $0x8] sm:$0xff]
        %v389 = vld [vmem:[%s8] sm:$0xff]
        %v390 = vld [vmem:[%s8 + $0x8] sm:$0xff]
        %v391 = vld [vmem:[%s8 + $0x10] sm:$0xff]
        %v392 = vld [vmem:[%s8 + $0x18] sm:$0xff]
        %v393 = vld [vmem:[%s360] sm:$0xff]
        %v394 = vld [vmem:[%s360 + $0x8] sm:$0xff]
        %v395 = vld [vmem:[%s360 + $0x10] sm:$0xff]
        %v396 = vld [vmem:[%s360 + $0x18] sm:$0xff]
        %vm397 = vcmask 261120
        %v399 = vsel %vm397, %v371, 0
        %401 = vmatprep.subr.mxu0 0.0
        %402 = vmatpush1.msra.mxu0 %v393
        %403 = vmatprep.subr.mxu0 0.0
        %404 = vmatpush1.msra.mxu0 %v394
        %405 = vmatprep.subr.mxu0 0.0
        %406 = vmatpush1.msra.mxu0 %v395
        %407 = vmatprep.subr.mxu0 0.0
        %408 = vmatpush1.msra.mxu0 %v396
        %409 = vmatprep.subr.mxu0 0.0
        %410 = vmatpush1.msra.mxu0 0.0
        %411 = vmatprep.subr.mxu0 0.0
        %412 = vmatpush1.msra.mxu0 0.0
        %413 = vmatprep.subr.mxu0 0.0
        %414 = vmatpush1.msra.mxu0 0.0
        %415 = vmatprep.subr.mxu0 0.0
        %416 = vmatpush1.msra.mxu0 0.0
        %417 = vmatprep.subr.mxu0 0.0
        %418 = vmatpush1.msra.mxu0 0.0
        %419 = vmatprep.subr.mxu0 0.0
        %420 = vmatpush1.msra.mxu0 0.0
        %421 = vmatprep.subr.mxu0 0.0
        %422 = vmatpush1.msra.mxu0 0.0
        %423 = vmatprep.subr.mxu0 0.0
        %424 = vmatpush1.msra.mxu0 0.0
        %425 = vmatprep.subr.mxu0 0.0
        %426 = vmatpush1.msra.mxu0 0.0
        %427 = vmatprep.subr.mxu0 0.0
        %428 = vmatpush1.msra.mxu0 0.0
        %429 = vmatprep.subr.mxu0 0.0
        %430 = vmatpush1.msra.mxu0 0.0
        %431 = vmatprep.subr.mxu0 0.0
        %432 = vmatpush1.msra.mxu0 0.0
        %433 = vmatprep.subr.mxu0 0.0
        %434 = vmatpush1.msra.mxu0 0.0
        %435 = vmatprep.subr.mxu0 0.0
        %436 = vmatpush1.msra.mxu0 0.0
        %437 = vmatprep.subr.mxu0 0.0
        %438 = vmatpush1.msra.mxu0 0.0
        %439 = vmatprep.subr.mxu0 0.0
        %440 = vmatpush1.msra.mxu0 0.0
        %441 = vmatprep.subr.mxu0 0.0
        %442 = vmatpush1.msra.mxu0 0.0
        %443 = vmatprep.subr.mxu0 0.0
        %444 = vmatpush1.msra.mxu0 0.0
        %445 = vmatprep.subr.mxu0 0.0
        %446 = vmatpush1.msra.mxu0 0.0
        %447 = vmatprep.subr.mxu0 0.0
        %448 = vmatpush1.msra.mxu0 0.0
        %449 = vmatprep.subr.mxu0 0.0
        %450 = vmatpush1.msra.mxu0 0.0
        %451 = vmatprep.subr.mxu0 0.0
        %452 = vmatpush1.msra.mxu0 0.0
        %453 = vmatprep.subr.mxu0 0.0
        %454 = vmatpush1.msra.mxu0 0.0
        %455 = vmatprep.subr.mxu0 0.0
        %456 = vmatpush1.msra.mxu0 0.0
        %457 = vmatprep.subr.mxu0 0.0
        %458 = vmatpush1.msra.mxu0 0.0
        %459 = vmatprep.subr.mxu0 0.0
        %460 = vmatpush1.msra.mxu0 0.0
        %461 = vmatprep.subr.mxu0 0.0
        %462 = vmatpush1.msra.mxu0 0.0
        %463 = vmatprep.subr.mxu0 0.0
        %464 = vmatpush1.msra.mxu0 0.0
        %465 = vmatprep.mubr.f32.mxu0 0.0
        %466 = vmatmul.mubr.f32.gmra.mrb[0].mxu0 %v399
        %v467 = vpop.f32.mrb[0].mxu0
        %v468 = vadd.f32 %v372, %v467
        %v469 = vpop.f32.mrb[0].mxu0
        %470 = vdwg.mxu0
        %vm471 = vcmask 31744
        %v473 = vsel %vm471, %v373, 0
        %v476 = vsel %vm471, %v374, 0
        %v479 = vsel %vm471, %v375, 0
        %v482 = vsel %vm471, %v376, 0
        %v485 = vsel %vm471, %v377, 0
        %v488 = vsel %vm471, %v378, 0
        %v491 = vsel %vm471, %v379, 0
        %v494 = vsel %vm471, %v380, 0
        %vm496 = vcmask 1043456
        %v498 = vsel %vm496, %v468, 0
        %500 = vmatprep.subr.mxu0 0.0
        %501 = vmatpush1.msra.mxu0 %v498
        %502 = vmatprep.subr.mxu0 0.0
        %503 = vmatpush1.msra.mxu0 0.0
        %504 = vmatprep.subr.mxu0 0.0
        %505 = vmatpush1.msra.mxu0 0.0
        %506 = vmatprep.subr.mxu0 0.0
        %507 = vmatpush1.msra.mxu0 0.0
        %508 = vmatprep.subr.mxu0 0.0
        %509 = vmatpush1.msra.mxu0 0.0
        %510 = vmatprep.subr.mxu0 0.0
        %511 = vmatpush1.msra.mxu0 0.0
        %512 = vmatprep.subr.mxu0 0.0
        %513 = vmatpush1.msra.mxu0 0.0
        %514 = vmatprep.subr.mxu0 0.0
        %515 = vmatpush1.msra.mxu0 0.0
        %516 = vmatprep.subr.mxu0 0.0
        %517 = vmatpush1.msra.mxu0 0.0
        %518 = vmatprep.subr.mxu0 0.0
        %519 = vmatpush1.msra.mxu0 0.0
        %520 = vmatprep.subr.mxu0 0.0
        %521 = vmatpush1.msra.mxu0 0.0
        %522 = vmatprep.subr.mxu0 0.0
        %523 = vmatpush1.msra.mxu0 0.0
        %524 = vmatprep.subr.mxu0 0.0
        %525 = vmatpush1.msra.mxu0 0.0
        %526 = vmatprep.subr.mxu0 0.0
        %527 = vmatpush1.msra.mxu0 0.0
        %528 = vmatprep.subr.mxu0 0.0
        %529 = vmatpush1.msra.mxu0 0.0
        %530 = vmatprep.subr.mxu0 0.0
        %531 = vmatpush1.msra.mxu0 0.0
        %532 = vmatprep.subr.mxu0 0.0
        %533 = vmatpush1.msra.mxu0 0.0
        %534 = vmatprep.subr.mxu0 0.0
        %535 = vmatpush1.msra.mxu0 0.0
        %536 = vmatprep.subr.mxu0 0.0
        %537 = vmatpush1.msra.mxu0 0.0
        %538 = vmatprep.subr.mxu0 0.0
        %539 = vmatpush1.msra.mxu0 0.0
        %540 = vmatprep.subr.mxu0 0.0
        %541 = vmatpush1.msra.mxu0 0.0
        %542 = vmatprep.subr.mxu0 0.0
        %543 = vmatpush1.msra.mxu0 0.0
        %544 = vmatprep.subr.mxu0 0.0
        %545 = vmatpush1.msra.mxu0 0.0
        %546 = vmatprep.subr.mxu0 0.0
        %547 = vmatpush1.msra.mxu0 0.0
        %548 = vmatprep.subr.mxu0 0.0
        %549 = vmatpush1.msra.mxu0 0.0
        %550 = vmatprep.subr.mxu0 0.0
        %551 = vmatpush1.msra.mxu0 0.0
        %552 = vmatprep.subr.mxu0 0.0
        %553 = vmatpush1.msra.mxu0 0.0
        %554 = vmatprep.subr.mxu0 0.0
        %555 = vmatpush1.msra.mxu0 0.0
        %556 = vmatprep.subr.mxu0 0.0
        %557 = vmatpush1.msra.mxu0 0.0
        %558 = vmatprep.subr.mxu0 0.0
        %559 = vmatpush1.msra.mxu0 0.0
        %560 = vmatprep.subr.mxu0 0.0
        %561 = vmatpush1.msra.mxu0 0.0
        %562 = vmatprep.subr.mxu0 0.0
        %563 = vmatpush1.msra.mxu0 0.0
        %564 = vmatprep.mubr.f32.mxu0 0.0
        %565 = vmatmul.mubr.f32.gmra.mrb[0].mxu0 %v473
        %v566 = vpop.f32.mrb[0].mxu0
        %v567 = vadd.f32 1.0, %v566
        %v568 = vpop.f32.mrb[0].mxu0
        %569 = vmatprep.mubr.f32.mxu0 0.0
        %570 = vmatmul.mubr.f32.gmra.mrb[0].mxu0 %v476
        %v571 = vpop.f32.mrb[0].mxu0
        %v572 = vadd.f32 1.0, %v571
        %v573 = vpop.f32.mrb[0].mxu0
        %574 = vmatprep.mubr.f32.mxu0 0.0
        %575 = vmatmul.mubr.f32.gmra.mrb[0].mxu0 %v479
        %v576 = vpop.f32.mrb[0].mxu0
        %v577 = vadd.f32 1.0, %v576
        %v578 = vpop.f32.mrb[0].mxu0
        %579 = vmatprep.mubr.f32.mxu0 0.0
        %580 = vmatmul.mubr.f32.gmra.mrb[0].mxu0 %v482
        %v581 = vpop.f32.mrb[0].mxu0
        %v582 = vadd.f32 1.0, %v581
        %v583 = vpop.f32.mrb[0].mxu0
        %584 = vmatprep.mubr.f32.mxu0 0.0
        %585 = vmatmul.mubr.f32.gmra.mrb[0].mxu0 %v485
        %v586 = vpop.f32.mrb[0].mxu0
        %v587 = vadd.f32 1.0, %v586
        %v588 = vpop.f32.mrb[0].mxu0
        %589 = vmatprep.mubr.f32.mxu0 0.0
        %590 = vmatmul.mubr.f32.gmra.mrb[0].mxu0 %v488
        %v591 = vpop.f32.mrb[0].mxu0
        %v592 = vadd.f32 1.0, %v591
        %v593 = vpop.f32.mrb[0].mxu0
        %594 = vmatprep.mubr.f32.mxu0 0.0
        %595 = vmatmul.mubr.f32.gmra.mrb[0].mxu0 %v491
        %v596 = vpop.f32.mrb[0].mxu0
        %v597 = vadd.f32 1.0, %v596
        %v598 = vpop.f32.mrb[0].mxu0
        %599 = vmatprep.mubr.f32.mxu0 0.0
        %600 = vmatmul.mubr.f32.gmra.mrb[0].mxu0 %v494
        %v601 = vpop.f32.mrb[0].mxu0
        %v602 = vadd.f32 1.0, %v601
        %v603 = vpop.f32.mrb[0].mxu0
        %604 = vdwg.mxu0
        %v605 = vld [vmem:[%s365] sm:$0xff]
        %v606 = vld [vmem:[%s365 + $0x8] sm:$0xff]
        %v607 = vld [vmem:[%s365 + $0x10] sm:$0xff]
        %v608 = vld [vmem:[%s365 + $0x18] sm:$0xff]
        %v609 = vld [vmem:[%s365 + $0x20] sm:$0xff]
        %v610 = vld [vmem:[%s365 + $0x28] sm:$0xff]
        %v611 = vld [vmem:[%s365 + $0x30] sm:$0xff]
        %v612 = vld [vmem:[%s365 + $0x38] sm:$0xff]
        %614 = vset.pattern.permute.xlu0 0
        %615 = vperm.xlu0 %614, %v567
        %v616 = vpop.permute.xlu0 %615
        %619 = vset.pattern.permute.xlu0 0
        %620 = vperm.xlu0 %619, %v572
        %v621 = vpop.permute.xlu0 %620
        %624 = vset.pattern.permute.xlu0 0
        %625 = vperm.xlu0 %624, %v577
        %v626 = vpop.permute.xlu0 %625
        %629 = vset.pattern.permute.xlu0 0
        %630 = vperm.xlu0 %629, %v582
        %v631 = vpop.permute.xlu0 %630
        %634 = vset.pattern.permute.xlu0 0
        %635 = vperm.xlu0 %634, %v587
        %v636 = vpop.permute.xlu0 %635
        %639 = vset.pattern.permute.xlu0 0
        %640 = vperm.xlu0 %639, %v592
        %v641 = vpop.permute.xlu0 %640
        %644 = vset.pattern.permute.xlu0 0
        %645 = vperm.xlu0 %644, %v597
        %v646 = vpop.permute.xlu0 %645
        %649 = vset.pattern.permute.xlu0 0
        %650 = vperm.xlu0 %649, %v602
        %v651 = vpop.permute.xlu0 %650
        %v653 = vmul.f32 %v605, %v616
        %v654 = vmul.f32 %v606, %v621
        %v655 = vmul.f32 %v607, %v626
        %v656 = vmul.f32 %v608, %v631
        %v657 = vmul.f32 %v609, %v636
        %v658 = vmul.f32 %v610, %v641
        %v659 = vmul.f32 %v611, %v646
        %v660 = vmul.f32 %v612, %v651
        %v661 = vld [vmem:[%s370] sm:$0xff]
        %v662 = vld [vmem:[%s370 + $0x8] sm:$0xff]
        %v663 = vld [vmem:[%s370 + $0x10] sm:$0xff]
        %v664 = vld [vmem:[%s370 + $0x18] sm:$0xff]
        %v665 = vld [vmem:[%s370 + $0x20] sm:$0xff]
        %v666 = vld [vmem:[%s370 + $0x28] sm:$0xff]
        %vm667 = vcmask 523264
        %v669 = vsel %vm667, %v381, 0
        %v672 = vsel %vm667, %v382, 0
        %v675 = vsel %vm667, %v383, 0
        %v678 = vsel %vm667, %v384, 0
        %v681 = vsel %vm667, %v385, 0
        %v684 = vsel %vm667, %v386, 0
        %686 = vmatprep.subr.mxu0 0.0
        %687 = vmatpush1.msra.mxu0 %v653
        %688 = vmatprep.subr.mxu0 0.0
        %689 = vmatpush1.msra.mxu0 %v654
        %690 = vmatprep.subr.mxu0 0.0
        %691 = vmatpush1.msra.mxu0 %v655
        %692 = vmatprep.subr.mxu0 0.0
        %693 = vmatpush1.msra.mxu0 %v656
        %694 = vmatprep.subr.mxu0 0.0
        %695 = vmatpush1.msra.mxu0 %v657
        %696 = vmatprep.subr.mxu0 0.0
        %697 = vmatpush1.msra.mxu0 %v658
        %698 = vmatprep.subr.mxu0 0.0
        %699 = vmatpush1.msra.mxu0 %v659
        %700 = vmatprep.subr.mxu0 0.0
        %701 = vmatpush1.msra.mxu0 %v660
        %702 = vmatprep.subr.mxu0 0.0
        %703 = vmatpush1.msra.mxu0 0.0
        %704 = vmatprep.subr.mxu0 0.0
        %705 = vmatpush1.msra.mxu0 0.0
        %706 = vmatprep.subr.mxu0 0.0
        %707 = vmatpush1.msra.mxu0 0.0
        %708 = vmatprep.subr.mxu0 0.0
        %709 = vmatpush1.msra.mxu0 0.0
        %710 = vmatprep.subr.mxu0 0.0
        %711 = vmatpush1.msra.mxu0 0.0
        %712 = vmatprep.subr.mxu0 0.0
        %713 = vmatpush1.msra.mxu0 0.0
        %714 = vmatprep.subr.mxu0 0.0
        %715 = vmatpush1.msra.mxu0 0.0
        %716 = vmatprep.subr.mxu0 0.0
        %717 = vmatpush1.msra.mxu0 0.0
        %718 = vmatprep.subr.mxu0 0.0
        %719 = vmatpush1.msra.mxu0 0.0
        %720 = vmatprep.subr.mxu0 0.0
        %721 = vmatpush1.msra.mxu0 0.0
        %722 = vmatprep.subr.mxu0 0.0
        %723 = vmatpush1.msra.mxu0 0.0
        %724 = vmatprep.subr.mxu0 0.0
        %725 = vmatpush1.msra.mxu0 0.0
        %726 = vmatprep.subr.mxu0 0.0
        %727 = vmatpush1.msra.mxu0 0.0
        %728 = vmatprep.subr.mxu0 0.0
        %729 = vmatpush1.msra.mxu0 0.0
        %730 = vmatprep.subr.mxu0 0.0
        %731 = vmatpush1.msra.mxu0 0.0
        %732 = vmatprep.subr.mxu0 0.0
        %733 = vmatpush1.msra.mxu0 0.0
        %734 = vmatprep.subr.mxu0 0.0
        %735 = vmatpush1.msra.mxu0 0.0
        %736 = vmatprep.subr.mxu0 0.0
        %737 = vmatpush1.msra.mxu0 0.0
        %738 = vmatprep.subr.mxu0 0.0
        %739 = vmatpush1.msra.mxu0 0.0
        %740 = vmatprep.subr.mxu0 0.0
        %741 = vmatpush1.msra.mxu0 0.0
        %742 = vmatprep.subr.mxu0 0.0
        %743 = vmatpush1.msra.mxu0 0.0
        %744 = vmatprep.subr.mxu0 0.0
        %745 = vmatpush1.msra.mxu0 0.0
        %746 = vmatprep.subr.mxu0 0.0
        %747 = vmatpush1.msra.mxu0 0.0
        %748 = vmatprep.subr.mxu0 0.0
        %749 = vmatpush1.msra.mxu0 0.0
        %750 = vmatprep.mubr.f32.mxu0 0.0
        %751 = vmatmul.mubr.f32.gmra.mrb[0].mxu0 %v669
        %v752 = vpop.f32.mrb[0].mxu0
        %v753 = vadd.f32 %v661, %v752
        %v754 = vpop.f32.mrb[0].mxu0
        %755 = vmatprep.mubr.f32.mxu0 0.0
        %756 = vmatmul.mubr.f32.gmra.mrb[0].mxu0 %v672
        %v757 = vpop.f32.mrb[0].mxu0
        %v758 = vadd.f32 %v662, %v757
        %v759 = vpop.f32.mrb[0].mxu0
        %760 = vmatprep.mubr.f32.mxu0 0.0
        %761 = vmatmul.mubr.f32.gmra.mrb[0].mxu0 %v675
        %v762 = vpop.f32.mrb[0].mxu0
        %v763 = vadd.f32 %v663, %v762
        %v764 = vpop.f32.mrb[0].mxu0
        %765 = vmatprep.mubr.f32.mxu0 0.0
        %766 = vmatmul.mubr.f32.gmra.mrb[0].mxu0 %v678
        %v767 = vpop.f32.mrb[0].mxu0
        %v768 = vadd.f32 %v664, %v767
        %v769 = vpop.f32.mrb[0].mxu0
        %770 = vmatprep.mubr.f32.mxu0 0.0
        %771 = vmatmul.mubr.f32.gmra.mrb[0].mxu0 %v681
        %v772 = vpop.f32.mrb[0].mxu0
        %v773 = vadd.f32 %v665, %v772
        %v774 = vpop.f32.mrb[0].mxu0
        %775 = vmatprep.mubr.f32.mxu0 0.0
        %776 = vmatmul.mubr.f32.gmra.mrb[0].mxu0 %v684
        %v777 = vpop.f32.mrb[0].mxu0
        %v778 = vadd.f32 %v666, %v777
        %v779 = vpop.f32.mrb[0].mxu0
        %780 = vdwg.mxu0
        %vm781 = vcmask 130048
        %v783 = vsel %vm781, %v753, 0
        %v786 = vsel %vm781, %v758, 0
        %v789 = vsel %vm781, %v763, 0
        %v792 = vsel %vm781, %v768, 0
        %v795 = vsel %vm781, %v773, 0
        %v798 = vsel %vm781, %v778, 0
        %800 = vmatprep.subr.mxu0 0.0
        %801 = vmatpush1.msra.mxu0 %v387
        %802 = vmatprep.subr.mxu0 0.0
        %803 = vmatpush1.msra.mxu0 %v388
        %804 = vmatprep.subr.mxu0 0.0
        %805 = vmatpush1.msra.mxu0 0.0
        %806 = vmatprep.subr.mxu0 0.0
        %807 = vmatpush1.msra.mxu0 0.0
        %808 = vmatprep.subr.mxu0 0.0
        %809 = vmatpush1.msra.mxu0 0.0
        %810 = vmatprep.subr.mxu0 0.0
        %811 = vmatpush1.msra.mxu0 0.0
        %812 = vmatprep.subr.mxu0 0.0
        %813 = vmatpush1.msra.mxu0 0.0
        %814 = vmatprep.subr.mxu0 0.0
        %815 = vmatpush1.msra.mxu0 0.0
        %816 = vmatprep.subr.mxu0 0.0
        %817 = vmatpush1.msra.mxu0 0.0
        %818 = vmatprep.subr.mxu0 0.0
        %819 = vmatpush1.msra.mxu0 0.0
        %820 = vmatprep.subr.mxu0 0.0
        %821 = vmatpush1.msra.mxu0 0.0
        %822 = vmatprep.subr.mxu0 0.0
        %823 = vmatpush1.msra.mxu0 0.0
        %824 = vmatprep.subr.mxu0 0.0
        %825 = vmatpush1.msra.mxu0 0.0
        %826 = vmatprep.subr.mxu0 0.0
        %827 = vmatpush1.msra.mxu0 0.0
        %828 = vmatprep.subr.mxu0 0.0
        %829 = vmatpush1.msra.mxu0 0.0
        %830 = vmatprep.subr.mxu0 0.0
        %831 = vmatpush1.msra.mxu0 0.0
        %832 = vmatprep.subr.mxu0 0.0
        %833 = vmatpush1.msra.mxu0 0.0
        %834 = vmatprep.subr.mxu0 0.0
        %835 = vmatpush1.msra.mxu0 0.0
        %836 = vmatprep.subr.mxu0 0.0
        %837 = vmatpush1.msra.mxu0 0.0
        %838 = vmatprep.subr.mxu0 0.0
        %839 = vmatpush1.msra.mxu0 0.0
        %840 = vmatprep.subr.mxu0 0.0
        %841 = vmatpush1.msra.mxu0 0.0
        %842 = vmatprep.subr.mxu0 0.0
        %843 = vmatpush1.msra.mxu0 0.0
        %844 = vmatprep.subr.mxu0 0.0
        %845 = vmatpush1.msra.mxu0 0.0
        %846 = vmatprep.subr.mxu0 0.0
        %847 = vmatpush1.msra.mxu0 0.0
        %848 = vmatprep.subr.mxu0 0.0
        %849 = vmatpush1.msra.mxu0 0.0
        %850 = vmatprep.subr.mxu0 0.0
        %851 = vmatpush1.msra.mxu0 0.0
        %852 = vmatprep.subr.mxu0 0.0
        %853 = vmatpush1.msra.mxu0 0.0
        %854 = vmatprep.subr.mxu0 0.0
        %855 = vmatpush1.msra.mxu0 0.0
        %856 = vmatprep.subr.mxu0 0.0
        %857 = vmatpush1.msra.mxu0 0.0
        %858 = vmatprep.subr.mxu0 0.0
        %859 = vmatpush1.msra.mxu0 0.0
        %860 = vmatprep.subr.mxu0 0.0
        %861 = vmatpush1.msra.mxu0 0.0
        %862 = vmatprep.subr.mxu0 0.0
        %863 = vmatpush1.msra.mxu0 0.0
        %864 = vmatprep.mubr.f32.mxu0 0.0
        %865 = vmatmul.mubr.f32.gmra.mrb[0].mxu0 %v783
        %v866 = vpop.f32.mrb[0].mxu0
        %v867 = vadd.f32 0.0, %v866
        %v868 = vpop.f32.mrb[0].mxu0
        %869 = vmatprep.mubr.f32.mxu0 0.0
        %870 = vmatmul.mubr.f32.gmra.mrb[0].mxu0 %v786
        %v871 = vpop.f32.mrb[0].mxu0
        %v872 = vadd.f32 0.0, %v871
        %v873 = vpop.f32.mrb[0].mxu0
        %874 = vmatprep.mubr.f32.mxu0 0.0
        %875 = vmatmul.mubr.f32.gmra.mrb[0].mxu0 %v789
        %v876 = vpop.f32.mrb[0].mxu0
        %v877 = vadd.f32 0.0, %v876
        %v878 = vpop.f32.mrb[0].mxu0
        %879 = vmatprep.mubr.f32.mxu0 0.0
        %880 = vmatmul.mubr.f32.gmra.mrb[0].mxu0 %v792
        %v881 = vpop.f32.mrb[0].mxu0
        %v882 = vadd.f32 0.0, %v881
        %v883 = vpop.f32.mrb[0].mxu0
        %884 = vmatprep.mubr.f32.mxu0 0.0
        %885 = vmatmul.mubr.f32.gmra.mrb[0].mxu0 %v795
        %v886 = vpop.f32.mrb[0].mxu0
        %v887 = vadd.f32 0.0, %v886
        %v888 = vpop.f32.mrb[0].mxu0
        %889 = vmatprep.mubr.f32.mxu0 0.0
        %890 = vmatmul.mubr.f32.gmra.mrb[0].mxu0 %v798
        %v891 = vpop.f32.mrb[0].mxu0
        %v892 = vadd.f32 0.0, %v891
        %v893 = vpop.f32.mrb[0].mxu0
        %894 = vdwg.mxu0
        %v896 = vsel %vm781, %v389, 0
        %v899 = vsel %vm781, %v390, 0
        %v902 = vsel %vm781, %v391, 0
        %v905 = vsel %vm781, %v392, 0
        %907 = vmatprep.subr.mxu0 0.0
        %908 = vmatpush1.msra.mxu0 %v867
        %909 = vmatprep.subr.mxu0 0.0
        %910 = vmatpush1.msra.mxu0 %v872
        %911 = vmatprep.subr.mxu0 0.0
        %912 = vmatpush1.msra.mxu0 0.0
        %913 = vmatprep.subr.mxu0 0.0
        %914 = vmatpush1.msra.mxu0 0.0
        %915 = vmatprep.subr.mxu0 0.0
        %916 = vmatpush1.msra.mxu0 0.0
        %917 = vmatprep.subr.mxu0 0.0
        %918 = vmatpush1.msra.mxu0 0.0
        %919 = vmatprep.subr.mxu0 0.0
        %920 = vmatpush1.msra.mxu0 0.0
        %921 = vmatprep.subr.mxu0 0.0
        %922 = vmatpush1.msra.mxu0 0.0
        %923 = vmatprep.subr.mxu0 0.0
        %924 = vmatpush1.msra.mxu0 0.0
        %925 = vmatprep.subr.mxu0 0.0
        %926 = vmatpush1.msra.mxu0 0.0
        %927 = vmatprep.subr.mxu0 0.0
        %928 = vmatpush1.msra.mxu0 0.0
        %929 = vmatprep.subr.mxu0 0.0
        %930 = vmatpush1.msra.mxu0 0.0
        %931 = vmatprep.subr.mxu0 0.0
        %932 = vmatpush1.msra.mxu0 0.0
        %933 = vmatprep.subr.mxu0 0.0
        %934 = vmatpush1.msra.mxu0 0.0
        %935 = vmatprep.subr.mxu0 0.0
        %936 = vmatpush1.msra.mxu0 0.0
        %937 = vmatprep.subr.mxu0 0.0
        %938 = vmatpush1.msra.mxu0 0.0
        %939 = vmatprep.subr.mxu0 0.0
        %940 = vmatpush1.msra.mxu0 0.0
        %941 = vmatprep.subr.mxu0 0.0
        %942 = vmatpush1.msra.mxu0 0.0
        %943 = vmatprep.subr.mxu0 0.0
        %944 = vmatpush1.msra.mxu0 0.0
        %945 = vmatprep.subr.mxu0 0.0
        %946 = vmatpush1.msra.mxu0 0.0
        %947 = vmatprep.subr.mxu0 0.0
        %948 = vmatpush1.msra.mxu0 0.0
        %949 = vmatprep.subr.mxu0 0.0
        %950 = vmatpush1.msra.mxu0 0.0
        %951 = vmatprep.subr.mxu0 0.0
        %952 = vmatpush1.msra.mxu0 0.0
        %953 = vmatprep.subr.mxu0 0.0
        %954 = vmatpush1.msra.mxu0 0.0
        %955 = vmatprep.subr.mxu0 0.0
        %956 = vmatpush1.msra.mxu0 0.0
        %957 = vmatprep.subr.mxu0 0.0
        %958 = vmatpush1.msra.mxu0 0.0
        %959 = vmatprep.subr.mxu0 0.0
        %960 = vmatpush1.msra.mxu0 0.0
        %961 = vmatprep.subr.mxu0 0.0
        %962 = vmatpush1.msra.mxu0 0.0
        %963 = vmatprep.subr.mxu0 0.0
        %964 = vmatpush1.msra.mxu0 0.0
        %965 = vmatprep.subr.mxu0 0.0
        %966 = vmatpush1.msra.mxu0 0.0
        %967 = vmatprep.subr.mxu0 0.0
        %968 = vmatpush1.msra.mxu0 0.0
        %969 = vmatprep.subr.mxu0 0.0
        %970 = vmatpush1.msra.mxu0 0.0
        %971 = vmatprep.mubr.f32.mxu0 0.0
        %972 = vmatmul.mubr.f32.gmra.mrb[0].mxu0 %v896
        %v973 = vpop.f32.mrb[0].mxu0
        %v974 = vadd.f32 0.0, %v973
        %v975 = vpop.f32.mrb[0].mxu0
        %976 = vmatprep.mubr.f32.mxu0 0.0
        %977 = vmatmul.mubr.f32.gmra.mrb[0].mxu0 %v899
        %v978 = vpop.f32.mrb[0].mxu0
        %v979 = vadd.f32 0.0, %v978
        %v980 = vpop.f32.mrb[0].mxu0
        %981 = vmatprep.mubr.f32.mxu0 0.0
        %982 = vmatmul.mubr.f32.gmra.mrb[0].mxu0 %v902
        %v983 = vpop.f32.mrb[0].mxu0
        %v984 = vadd.f32 0.0, %v983
        %v985 = vpop.f32.mrb[0].mxu0
        %986 = vmatprep.mubr.f32.mxu0 0.0
        %987 = vmatmul.mubr.f32.gmra.mrb[0].mxu0 %v905
        %v988 = vpop.f32.mrb[0].mxu0
        %v989 = vadd.f32 0.0, %v988
        %v990 = vpop.f32.mrb[0].mxu0
        %991 = vdwg.mxu0
        %992 = vst.msk [vmem:[%s355] sm:$0xff] %vm397, %v974
        %993 = vst.msk [vmem:[%s355 + $0x8] sm:$0xff] %vm397, %v979
        %994 = vst.msk [vmem:[%s355 + $0x10] sm:$0xff] %vm397, %v984
        %995 = vst.msk [vmem:[%s355 + $0x18] sm:$0xff] %vm397, %v989
        %996 = vmatprep.subr.mxu0 0.0
        %997 = vmatpush1.msra.mxu0 %v877
        %998 = vmatprep.subr.mxu0 0.0
        %999 = vmatpush1.msra.mxu0 %v882
        %1000 = vmatprep.subr.mxu0 0.0
        %1001 = vmatpush1.msra.mxu0 0.0
        %1002 = vmatprep.subr.mxu0 0.0
        %1003 = vmatpush1.msra.mxu0 0.0
        %1004 = vmatprep.subr.mxu0 0.0
        %1005 = vmatpush1.msra.mxu0 0.0
        %1006 = vmatprep.subr.mxu0 0.0
        %1007 = vmatpush1.msra.mxu0 0.0
        %1008 = vmatprep.subr.mxu0 0.0
        %1009 = vmatpush1.msra.mxu0 0.0
        %1010 = vmatprep.subr.mxu0 0.0
        %1011 = vmatpush1.msra.mxu0 0.0
        %1012 = vmatprep.subr.mxu0 0.0
        %1013 = vmatpush1.msra.mxu0 0.0
        %1014 = vmatprep.subr.mxu0 0.0
        %1015 = vmatpush1.msra.mxu0 0.0
        %1016 = vmatprep.subr.mxu0 0.0
        %1017 = vmatpush1.msra.mxu0 0.0
        %1018 = vmatprep.subr.mxu0 0.0
        %1019 = vmatpush1.msra.mxu0 0.0
        %1020 = vmatprep.subr.mxu0 0.0
        %1021 = vmatpush1.msra.mxu0 0.0
        %1022 = vmatprep.subr.mxu0 0.0
        %1023 = vmatpush1.msra.mxu0 0.0
        %1024 = vmatprep.subr.mxu0 0.0
        %1025 = vmatpush1.msra.mxu0 0.0
        %1026 = vmatprep.subr.mxu0 0.0
        %1027 = vmatpush1.msra.mxu0 0.0
        %1028 = vmatprep.subr.mxu0 0.0
        %1029 = vmatpush1.msra.mxu0 0.0
        %1030 = vmatprep.subr.mxu0 0.0
        %1031 = vmatpush1.msra.mxu0 0.0
        %1032 = vmatprep.subr.mxu0 0.0
        %1033 = vmatpush1.msra.mxu0 0.0
        %1034 = vmatprep.subr.mxu0 0.0
        %1035 = vmatpush1.msra.mxu0 0.0
        %1036 = vmatprep.subr.mxu0 0.0
        %1037 = vmatpush1.msra.mxu0 0.0
        %1038 = vmatprep.subr.mxu0 0.0
        %1039 = vmatpush1.msra.mxu0 0.0
        %1040 = vmatprep.subr.mxu0 0.0
        %1041 = vmatpush1.msra.mxu0 0.0
        %1042 = vmatprep.subr.mxu0 0.0
        %1043 = vmatpush1.msra.mxu0 0.0
        %1044 = vmatprep.subr.mxu0 0.0
        %1045 = vmatpush1.msra.mxu0 0.0
        %1046 = vmatprep.subr.mxu0 0.0
        %1047 = vmatpush1.msra.mxu0 0.0
        %1048 = vmatprep.subr.mxu0 0.0
        %1049 = vmatpush1.msra.mxu0 0.0
        %1050 = vmatprep.subr.mxu0 0.0
        %1051 = vmatpush1.msra.mxu0 0.0
        %1052 = vmatprep.subr.mxu0 0.0
        %1053 = vmatpush1.msra.mxu0 0.0
        %1054 = vmatprep.subr.mxu0 0.0
        %1055 = vmatpush1.msra.mxu0 0.0
        %1056 = vmatprep.subr.mxu0 0.0
        %1057 = vmatpush1.msra.mxu0 0.0
        %1058 = vmatprep.subr.mxu0 0.0
        %1059 = vmatpush1.msra.mxu0 0.0
        %1060 = vmatprep.mubr.f32.mxu0 0.0
        %1061 = vmatmul.mubr.f32.gmra.mrb[0].mxu0 %v896
        %v1062 = vpop.f32.mrb[0].mxu0
        %v1063 = vadd.f32 0.0, %v1062
        %v1064 = vpop.f32.mrb[0].mxu0
        %1065 = vmatprep.mubr.f32.mxu0 0.0
        %1066 = vmatmul.mubr.f32.gmra.mrb[0].mxu0 %v899
        %v1067 = vpop.f32.mrb[0].mxu0
        %v1068 = vadd.f32 0.0, %v1067
        %v1069 = vpop.f32.mrb[0].mxu0
        %1070 = vmatprep.mubr.f32.mxu0 0.0
        %1071 = vmatmul.mubr.f32.gmra.mrb[0].mxu0 %v902
        %v1072 = vpop.f32.mrb[0].mxu0
        %v1073 = vadd.f32 0.0, %v1072
        %v1074 = vpop.f32.mrb[0].mxu0
        %1075 = vmatprep.mubr.f32.mxu0 0.0
        %1076 = vmatmul.mubr.f32.gmra.mrb[0].mxu0 %v905
        %v1077 = vpop.f32.mrb[0].mxu0
        %v1078 = vadd.f32 0.0, %v1077
        %v1079 = vpop.f32.mrb[0].mxu0
        %1080 = vdwg.mxu0
        %1081 = vst.msk [vmem:[%s355 + $0x20] sm:$0xff] %vm397, %v1063
        %1082 = vst.msk [vmem:[%s355 + $0x28] sm:$0xff] %vm397, %v1068
        %1083 = vst.msk [vmem:[%s355 + $0x30] sm:$0xff] %vm397, %v1073
        %1084 = vst.msk [vmem:[%s355 + $0x38] sm:$0xff] %vm397, %v1078
        %1085 = vmatprep.subr.mxu0 0.0
        %1086 = vmatpush1.msra.mxu0 %v887
        %1087 = vmatprep.subr.mxu0 0.0
        %1088 = vmatpush1.msra.mxu0 %v892
        %1089 = vmatprep.subr.mxu0 0.0
        %1090 = vmatpush1.msra.mxu0 0.0
        %1091 = vmatprep.subr.mxu0 0.0
        %1092 = vmatpush1.msra.mxu0 0.0
        %1093 = vmatprep.subr.mxu0 0.0
        %1094 = vmatpush1.msra.mxu0 0.0
        %1095 = vmatprep.subr.mxu0 0.0
        %1096 = vmatpush1.msra.mxu0 0.0
        %1097 = vmatprep.subr.mxu0 0.0
        %1098 = vmatpush1.msra.mxu0 0.0
        %1099 = vmatprep.subr.mxu0 0.0
        %1100 = vmatpush1.msra.mxu0 0.0
        %1101 = vmatprep.subr.mxu0 0.0
        %1102 = vmatpush1.msra.mxu0 0.0
        %1103 = vmatprep.subr.mxu0 0.0
        %1104 = vmatpush1.msra.mxu0 0.0
        %1105 = vmatprep.subr.mxu0 0.0
        %1106 = vmatpush1.msra.mxu0 0.0
        %1107 = vmatprep.subr.mxu0 0.0
        %1108 = vmatpush1.msra.mxu0 0.0
        %1109 = vmatprep.subr.mxu0 0.0
        %1110 = vmatpush1.msra.mxu0 0.0
        %1111 = vmatprep.subr.mxu0 0.0
        %1112 = vmatpush1.msra.mxu0 0.0
        %1113 = vmatprep.subr.mxu0 0.0
        %1114 = vmatpush1.msra.mxu0 0.0
        %1115 = vmatprep.subr.mxu0 0.0
        %1116 = vmatpush1.msra.mxu0 0.0
        %1117 = vmatprep.subr.mxu0 0.0
        %1118 = vmatpush1.msra.mxu0 0.0
        %1119 = vmatprep.subr.mxu0 0.0
        %1120 = vmatpush1.msra.mxu0 0.0
        %1121 = vmatprep.subr.mxu0 0.0
        %1122 = vmatpush1.msra.mxu0 0.0
        %1123 = vmatprep.subr.mxu0 0.0
        %1124 = vmatpush1.msra.mxu0 0.0
        %1125 = vmatprep.subr.mxu0 0.0
        %1126 = vmatpush1.msra.mxu0 0.0
        %1127 = vmatprep.subr.mxu0 0.0
        %1128 = vmatpush1.msra.mxu0 0.0
        %1129 = vmatprep.subr.mxu0 0.0
        %1130 = vmatpush1.msra.mxu0 0.0
        %1131 = vmatprep.subr.mxu0 0.0
        %1132 = vmatpush1.msra.mxu0 0.0
        %1133 = vmatprep.subr.mxu0 0.0
        %1134 = vmatpush1.msra.mxu0 0.0
        %1135 = vmatprep.subr.mxu0 0.0
        %1136 = vmatpush1.msra.mxu0 0.0
        %1137 = vmatprep.subr.mxu0 0.0
        %1138 = vmatpush1.msra.mxu0 0.0
        %1139 = vmatprep.subr.mxu0 0.0
        %1140 = vmatpush1.msra.mxu0 0.0
        %1141 = vmatprep.subr.mxu0 0.0
        %1142 = vmatpush1.msra.mxu0 0.0
        %1143 = vmatprep.subr.mxu0 0.0
        %1144 = vmatpush1.msra.mxu0 0.0
        %1145 = vmatprep.subr.mxu0 0.0
        %1146 = vmatpush1.msra.mxu0 0.0
        %1147 = vmatprep.subr.mxu0 0.0
        %1148 = vmatpush1.msra.mxu0 0.0
        %1149 = vmatprep.mubr.f32.mxu0 0.0
        %1150 = vmatmul.mubr.f32.gmra.mrb[0].mxu0 %v896
        %v1151 = vpop.f32.mrb[0].mxu0
        %v1152 = vadd.f32 0.0, %v1151
        %v1153 = vpop.f32.mrb[0].mxu0
        %1154 = vmatprep.mubr.f32.mxu0 0.0
        %1155 = vmatmul.mubr.f32.gmra.mrb[0].mxu0 %v899
        %v1156 = vpop.f32.mrb[0].mxu0
        %v1157 = vadd.f32 0.0, %v1156
        %v1158 = vpop.f32.mrb[0].mxu0
        %1159 = vmatprep.mubr.f32.mxu0 0.0
        %1160 = vmatmul.mubr.f32.gmra.mrb[0].mxu0 %v902
        %v1161 = vpop.f32.mrb[0].mxu0
        %v1162 = vadd.f32 0.0, %v1161
        %v1163 = vpop.f32.mrb[0].mxu0
        %1164 = vmatprep.mubr.f32.mxu0 0.0
        %1165 = vmatmul.mubr.f32.gmra.mrb[0].mxu0 %v905
        %v1166 = vpop.f32.mrb[0].mxu0
        %v1167 = vadd.f32 0.0, %v1166
        %v1168 = vpop.f32.mrb[0].mxu0
        %1169 = vdwg.mxu0
        %1170 = vst.msk [vmem:[%s355 + $0x40] sm:$0xff] %vm397, %v1152
        %1171 = vst.msk [vmem:[%s355 + $0x48] sm:$0xff] %vm397, %v1157
        %1172 = vst.msk [vmem:[%s355 + $0x50] sm:$0xff] %vm397, %v1162
        %1173 = vst.msk [vmem:[%s355 + $0x58] sm:$0xff] %vm397, %v1167
        %s1174 = sand.u32 %s235, 1
        %s1175 = scalar_lea.sflag [#allocation3], %s1174
        %s1176 = sand.u32 %s235, 1
        %s1177 = smul.addr %s1176, 96
        %s1178 = scalar_lea.vmem [#allocation2], %s1177
        // Predicated region
        $region57: #{rgb_block_forward.1} parent=55 // pred_check
          %p1179 = pneg %p245
        $region58: #{rgb_block_forward.1} parent=55 // pred_check_branch
          %1181 = sbr.rel (%p1179) target = $region60
        $region59: #{rgb_block_forward.1} parent=55 // pred_region
          %s1183 = ssub.s32 1536, 1536
          %1184 = vsyncadd %s1175, %s1183
          %s1185 = smul.addr %s23, 12
          %s1186 = smul.addr %s1185, 128
          %s1187 = scalar_lea.hbm %s9, %s1186
          %s1188 = sshll.u32 %s1178, 4
          %s1189 = int_to_ptr.vmem [resolvable:$true] %s1188
          %1194 = dma.vmem_to_hbm [thread:$0]  %s1189, 1536, %s1187, %s1175, 128, 128, 8
        $region60: #{rgb_block_forward.1} parent=55 // pred_fallthru
          _
      $region56: #{rgb_block_forward.1} parent=5 // pred_fallthru
        _
      %p1195 = scmp.le.s32.totalorder 2, %s18
      // Predicated region
      $region61: #{rgb_block_forward.1} parent=5 // pred_check
        %p1196 = pneg %p1195
      $region62: #{rgb_block_forward.1} parent=5 // pred_check_branch
        %1198 = sbr.rel (%p1196) target = $region64
      $region63: #{rgb_block_forward.1} parent=5 // pred_region
        %s1199 = ssub.s32 %s18, 2
        // Predicated region
        $region65: #{rgb_block_forward.1} parent=63 // pred_check
          %p1200 = pneg %p251
        $region66: #{rgb_block_forward.1} parent=63 // pred_check_branch
          %1202 = sbr.rel (%p1200) target = $region68
        $region67: #{rgb_block_forward.1} parent=63 // pred_region
          %s1203 = sand.u32 %s236, 1
          %s1204 = scalar_lea.sflag [#allocation3], %s1203
          %s1205 = sand.u32 %s236, 1
          %s1206 = smul.addr %s1205, 96
          %s1207 = scalar_lea.vmem [#allocation2], %s1206
          %1208 = dma.done %s1204, 1536
        $region68: #{rgb_block_forward.1} parent=63 // pred_fallthru
          _
      $region64: #{rgb_block_forward.1} parent=5 // pred_fallthru
        _
    $region6: #{rgb_block_forward.1} parent=1 // loop_footer
      %s22 = sadd.s32 1, %s18
    $region7: #{rgb_block_forward.1} parent=1 // loop_footer_branch
      %17 = sbr.rel target = $region3
    $region8: #{rgb_block_forward.1} parent=1 // loop_exit
      _
    %1209 = vsyncpa [#allocation3], 1
    %s1210 = scalar_lea.sflag [#allocation3], 1
    %1211 = vsyncpa %s1210, 1

</llo_original>
